<compile_context>
chip_gen: v6e
topology: v6e:2x2x1
jax: 0.10.0
libtpu: 0.0.40
codegen_flags: <defaults>
</compile_context>

<pallas_src>
import functools

import jax
import jax.numpy as jnp
from jax.experimental import pallas as pl
from jax.experimental.pallas import tpu as pltpu


def _round_up(x, m):
    return (x + m - 1) // m * m


def _sublane(dtype):
    # Second-minor tiling granularity: 8 rows (32-bit), 16 (16-bit), 32 (8-bit).
    return {4: 8, 2: 16, 1: 32}[jnp.dtype(dtype).itemsize]


def _vmem_budget_bytes():
    """Generation-aware VMEM budget with ~25% headroom for Mosaic internals:
    ~48 MiB on v7x (64 MiB/TC), ~96 MiB on v5e/v6e (128 MiB)."""
    cap = 128 * 1024 * 1024
    try:
        cap = int(getattr(pltpu.get_tpu_info(), "vmem_capacity_bytes", cap)) or cap
    except Exception:  # API unavailable -> conservative (v7x-safe) default
        cap = 64 * 1024 * 1024
    return (cap // 4) * 3


def _row_tiles(n, sub, tm_cap):
    """Pick (tm, n_pad): the largest row tile <= tm_cap (sublane-aligned) that
    divides the sublane-rounded row count -- so x normally needs *no* padding
    copy -- while preferring >= 2 row blocks (v7x shards the 'parallel' row
    axis across its two TensorCores)."""
    n_sub = _round_up(max(n, 1), sub)
    cap = max(sub, min((tm_cap // sub) * sub, n_sub))
    divisors = [t for t in range(sub, cap + 1, sub) if n_sub % t == 0]
    multi = [t for t in divisors if n_sub // t >= 2]
    tm = max(multi) if multi else (max(divisors) if divisors else sub)
    if tm >= max(sub, cap // 4):
        return tm, n_sub                      # no row padding beyond sublane round-up
    return cap, _round_up(n_sub, cap)         # awkward factorization: pad rows


def _linear_resident_kernel(x_ref, w_ref, b_ref, o_ref, *, compute_dtype):
    # Whole weight resident in VMEM; single reduction step, no acc scratch.
    # x is cast in-kernel (free VPU work hidden under the MXU).
    x = x_ref[...].astype(compute_dtype)
    acc = jnp.dot(x, w_ref[...], preferred_element_type=jnp.float32)
    o_ref[...] = (acc + b_ref[...]).astype(o_ref.dtype)


def _linear_tiled_kernel(x_ref, w_ref, b_ref, o_ref, acc_ref, *, compute_dtype):
    # General tiled path: f32 accumulator carried across the reduction axis,
    # bias added once (in f32) on the last K step.
    k = pl.program_id(2)

    @pl.when(k == 0)
    def _():
        acc_ref[...] = jnp.zeros_like(acc_ref)

    acc_ref[...] += jnp.dot(
        x_ref[...].astype(compute_dtype), w_ref[...],
        preferred_element_type=jnp.float32,
    )

    @pl.when(k == pl.num_programs(2) - 1)
    def _():
        o_ref[...] = (acc_ref[...] + b_ref[...]).astype(o_ref.dtype)


@functools.partial(jax.jit, static_argnames=("tm_max", "compute_dtype"))
def linear_pallas(x2d, w, b, *, tm_max=512, compute_dtype=None):
    """y = x2d @ w + b via Pallas.

    x2d: (N, F), w: (F, O), b: (O,).
    Fast path keeps the whole (O-padded) weight resident in VMEM and streams
    x/y once; the general path tiles (rows, O, F) with an f32 accumulator.
    compute_dtype=jnp.bfloat16 runs the MXU in bf16 with f32 accumulation on
    every TPU generation (v5e's MXU is bf16-native too); output keeps x.dtype.
    """
    n, f = x2d.shape
    f_w, o = w.shape
    assert f_w == f, (f_w, f)
    out_dtype = x2d.dtype
    compute_dtype = jnp.dtype(x2d.dtype if compute_dtype is None else compute_dtype)

    # Degenerate shapes: keep semantics, skip the kernel (guards empty batch).
    if n == 0 or o == 0:
        return jnp.zeros((n, o), out_dtype)
    if f == 0:
        return jnp.broadcast_to(b.astype(out_dtype), (n, o))

    x_bytes = jnp.dtype(x2d.dtype).itemsize
    w_bytes = compute_dtype.itemsize
    out_bytes = jnp.dtype(out_dtype).itemsize
    sub = _sublane(x2d.dtype)                 # row granularity for x / out blocks
    budget = _vmem_budget_bytes()

    o_pad128 = _round_up(o, 128)              # lane-dense (unmasked) output stores

    def _fast_bytes(tm):
        # Pallas double-buffers every input spec (conservative even though the
        # constant-index W is DMA'd only once).
        return (2 * f * o_pad128 * w_bytes + 2 * o_pad128 * 4
                + 2 * tm * f * x_bytes + 2 * tm * o_pad128 * out_bytes)

    if _fast_bytes(sub) <= budget:
        # ------------- Fast path: weight resident in VMEM -------------------
        o_pad = o_pad128
        tm_cap = max(sub, (tm_max // sub) * sub)
        while tm_cap > sub and _fast_bytes(tm_cap) > budget:
            tm_cap = max(sub, (tm_cap // 2 // sub) * sub)
        tm, n_pad = _row_tiles(n, sub, tm_cap)

        x_p = x2d if n_pad == n else jnp.pad(x2d, ((0, n_pad - n), (0, 0)))
        w_p = w.astype(compute_dtype)
        if o_pad != o:
            w_p = jnp.pad(w_p, ((0, 0), (0, o_pad - o)))
        b_p = b.astype(jnp.float32).reshape(1, o)
        if o_pad != o:
            b_p = jnp.pad(b_p, ((0, 0), (0, o_pad - o)))

        # TODO(synk): if a profile shows exposed x-input DMA, add
        # pipeline_mode=pl.Buffered(3) on the x BlockSpec (extra tm*F buffer).
        out = pl.pallas_call(
            functools.partial(_linear_resident_kernel, compute_dtype=compute_dtype),
            out_shape=jax.ShapeDtypeStruct((n_pad, o_pad), out_dtype),
            grid_spec=pltpu.PrefetchScalarGridSpec(
                num_scalar_prefetch=0,
                grid=(n_pad // tm,),
                in_specs=[
                    pl.BlockSpec((tm, f), lambda i: (i, 0)),
                    pl.BlockSpec((f, o_pad), lambda i: (0, 0)),   # constant -> DMA'd once
                    pl.BlockSpec((1, o_pad), lambda i: (0, 0)),   # constant -> DMA'd once
                ],
                out_specs=pl.BlockSpec((tm, o_pad), lambda i: (i, 0)),
            ),
            compiler_params=pltpu.CompilerParams(
                dimension_semantics=("parallel",),
                vmem_limit_bytes=budget,
            ),
        )(x_p, w_p, b_p)
        return out[:n, :o]

    # ----------------- General path: tile O and F as well -------------------
    # 256-aligned tn/tk match the 2x256x256 MXU on v6e/v7x (256 is also a
    # multiple of v5e's 128 granule and of the lane width).
    tn = min(512, _round_up(o, 256))
    o_pad = _round_up(o, tn)
    tk = min(4096, _round_up(f, 256))
    tm, n_pad = _row_tiles(n, sub, tm_max)

    def _tiled_bytes(tm_, tn_, tk_):
        return (2 * tm_ * tk_ * x_bytes + 2 * tk_ * tn_ * w_bytes
                + 2 * tm_ * tn_ * out_bytes + tm_ * tn_ * 4 + 2 * tn_ * 4)

    while tk > 256 and _tiled_bytes(tm, tn, tk) > budget:
        tk = max(256, _round_up(tk // 2, 256))
    while tm > sub and _tiled_bytes(tm, tn, tk) > budget:
        tm = max(sub, (tm // 2 // sub) * sub)
        n_pad = _round_up(n, tm)
    f_pad = _round_up(f, tk)

    x_p = x2d
    if n_pad != n or f_pad != f:
        x_p = jnp.pad(x2d, ((0, n_pad - n), (0, f_pad - f)))
    w_p = w.astype(compute_dtype)
    if f_pad != f or o_pad != o:
        w_p = jnp.pad(w_p, ((0, f_pad - f), (0, o_pad - o)))
    b_p = b.astype(jnp.float32).reshape(1, o)
    if o_pad != o:
        b_p = jnp.pad(b_p, ((0, 0), (0, o_pad - o)))

    grid = (n_pad // tm, o_pad // tn, f_pad // tk)
    out = pl.pallas_call(
        functools.partial(_linear_tiled_kernel, compute_dtype=compute_dtype),
        out_shape=jax.ShapeDtypeStruct((n_pad, o_pad), out_dtype),
        grid_spec=pltpu.PrefetchScalarGridSpec(
            num_scalar_prefetch=0,
            grid=grid,
            in_specs=[
                pl.BlockSpec((tm, tk), lambda i, j, k: (i, k)),
                pl.BlockSpec((tk, tn), lambda i, j, k: (k, j)),
                pl.BlockSpec((1, tn), lambda i, j, k: (0, j)),
            ],
            out_specs=pl.BlockSpec((tm, tn), lambda i, j, k: (i, j)),
            scratch_shapes=[pltpu.VMEM((tm, tn), jnp.float32)],
        ),
        compiler_params=pltpu.CompilerParams(
            dimension_semantics=("parallel", "parallel", "arbitrary"),
            vmem_limit_bytes=budget,
        ),
    )(x_p, w_p, b_p)
    return out[:n, :o]


def time_distributed_linear(x, w, b, *, batch_first=False, compute_dtype=None):
    """Mirror of TimeDistributed(nn.Linear(F, O), batch_first).forward(x).

    w: (F, O)  (PyTorch Linear weight transposed),  b: (O,)
    compute_dtype: optionally jnp.bfloat16 for a bf16 MXU path (f32
    accumulation + f32 bias add) on v5e / v6e / v7x; output keeps x.dtype.
    """
    # TODO(synk): TimeDistributed wraps an arbitrary nn.Module; only the
    # nn.Linear specialization is implemented as a Pallas kernel here.
    if x.ndim <= 2:
        x2d = x if x.ndim == 2 else x.reshape(1, -1)
        y = linear_pallas(x2d, w, b, compute_dtype=compute_dtype)
        return y if x.ndim == 2 else y[0]

    feat = x.shape[-1]
    x_reshape = x.reshape(-1, feat)                       # view(-1, x.size(-1))
    y = linear_pallas(x_reshape, w, b, compute_dtype=compute_dtype)
    out_f = y.shape[-1]
    if batch_first:
        return y.reshape(x.shape[0], -1, out_f)           # view(B, -1, O)
    else:
        return y.reshape(-1, x.shape[1], out_f)           # view(-1, x.size(1), O)


if __name__ == "__main__":
    key = jax.random.PRNGKey(0)
    kx, kw, kb = jax.random.split(key, 3)

    B, T, F, O = 2, 8, 32, 64
    # batch_first=True convention: x is (B, T, F)
    x = jax.random.normal(kx, (B, T, F), dtype=jnp.float32)
    # Deterministic synthetic Linear params (PyTorch shape (O, F) -> store (F, O)).
    w = (jax.random.normal(kw, (O, F), dtype=jnp.float32) * 0.05).T
    b = jax.random.normal(kb, (O,), dtype=jnp.float32) * 0.05

    # f32 path (batch_first=True), tight tolerance.
    y = time_distributed_linear(x, w, b, batch_first=True)
    y = jax.block_until_ready(y)
    y_ref = (x.reshape(-1, F) @ w + b).reshape(B, -1, O)
    assert y.shape == (B, T, O), y.shape
    assert jnp.allclose(y, y_ref, atol=1e-5, rtol=1e-5)

    # batch_first=False path: x is (T, B, F).
    x_tbf = jnp.transpose(x, (1, 0, 2))
    y2 = time_distributed_linear(x_tbf, w, b, batch_first=False)
    y2 = jax.block_until_ready(y2)
    y2_ref = (x_tbf.reshape(-1, F) @ w + b).reshape(-1, B, O)
    assert y2.shape == (T, B, O), y2.shape
    assert jnp.allclose(y2, y2_ref, atol=1e-5, rtol=1e-5)

    # bf16 compute path (MXU-native on all generations), looser tolerance.
    y_bf = time_distributed_linear(
        x, w, b, batch_first=True, compute_dtype=jnp.bfloat16)
    y_bf = jax.block_until_ready(y_bf)
    assert y_bf.shape == (B, T, O), y_bf.shape
    assert jnp.allclose(y_bf, y_ref, atol=2e-2, rtol=2e-2)

    print("KERNEL_OK")
</pallas_src>

<mosaic_0001>
module attributes {stable_mosaic.version = 11 : i64} {
  func.func @_linear_resident_kernel(%arg0: i32, %arg1: memref<8x32xf32, #tpu.memory_space<vmem>>, %arg2: memref<32x128xf32, #tpu.memory_space<vmem>>, %arg3: memref<1x128xf32, #tpu.memory_space<vmem>>, %arg4: memref<8x128xf32, #tpu.memory_space<vmem>>) attributes {dimension_semantics = [#tpu.dimension_semantics<parallel>], iteration_bounds = array<i64: 2>, scalar_prefetch = 0 : i64, scratch_operands = 0 : i64, tpu.core_type = #tpu.core_type<tc>, window_params = [{transform_indices = @transform_0, window_bounds = array<i64: 8, 32>}, {pipeline_mode = #tpu.pipeline_mode<synchronous>, transform_indices = @transform_1, window_bounds = array<i64: 32, 128>}, {pipeline_mode = #tpu.pipeline_mode<synchronous>, transform_indices = @transform_2, window_bounds = array<i64: 1, 128>}, {transform_indices = @transform_3, window_bounds = array<i64: 8, 128>}]} {
    %c0 = arith.constant 0 : index
    %c0_0 = arith.constant 0 : index
    %0 = vector.load %arg1[%c0, %c0_0] : memref<8x32xf32, #tpu.memory_space<vmem>>, vector<8x32xf32>
    %c0_1 = arith.constant 0 : index
    %c0_2 = arith.constant 0 : index
    %1 = vector.load %arg2[%c0_1, %c0_2] : memref<32x128xf32, #tpu.memory_space<vmem>>, vector<32x128xf32>
    %cst = arith.constant dense<0.000000e+00> : vector<8x128xf32>
    %2 = tpu.matmul %0, %1, %cst {dimension_numbers = #tpu.dot_dimension_numbers<[1], [0], [0], [1], [0, 0, 1, 1], [], []>} : vector<8x32xf32>, vector<32x128xf32>, vector<8x128xf32> -> vector<8x128xf32>
    %c0_3 = arith.constant 0 : index
    %c0_4 = arith.constant 0 : index
    %3 = vector.load %arg3[%c0_3, %c0_4] : memref<1x128xf32, #tpu.memory_space<vmem>>, vector<1x128xf32>
    %4 = vector.broadcast %3 : vector<1x128xf32> to vector<8x128xf32>
    %5 = arith.addf %2, %4 : vector<8x128xf32>
    %c0_5 = arith.constant 0 : index
    %c0_6 = arith.constant 0 : index
    %6 = vector.load %arg4[%c0_5, %c0_6] : memref<8x128xf32, #tpu.memory_space<vmem>>, vector<8x128xf32>
    tpu.vector_store %arg4[%c0_5, %c0_6], %5 {strides = array<i32>} : memref<8x128xf32, #tpu.memory_space<vmem>>, vector<8x128xf32>,
    return
  }
  func.func @transform_0(%arg0: i32) -> (i32, i32) {
    %c0_i32 = arith.constant 0 : i32
    %c0_i32_0 = arith.constant 0 : i32
    return %arg0, %c0_i32 : i32, i32
  }
  func.func @transform_1(%arg0: i32) -> (i32, i32) {
    %c0_i32 = arith.constant 0 : i32
    %c0_i32_0 = arith.constant 0 : i32
    %c0_i32_1 = arith.constant 0 : i32
    return %c0_i32, %c0_i32_0 : i32, i32
  }
  func.func @transform_2(%arg0: i32) -> (i32, i32) {
    %c0_i32 = arith.constant 0 : i32
    %c0_i32_0 = arith.constant 0 : i32
    %c0_i32_1 = arith.constant 0 : i32
    return %c0_i32, %c0_i32_0 : i32, i32
  }
  func.func @transform_3(%arg0: i32) -> (i32, i32) {
    %c0_i32 = arith.constant 0 : i32
    %c0_i32_0 = arith.constant 0 : i32
    return %arg0, %c0_i32 : i32, i32
  }
}

</mosaic_0001>

<llo_original>
// kernel: linear_pallas.1
$region0: #{linear_pallas.1}
  #allocation0 [shape = 'u32[]', space=smem, size = 0x4, offset = 0x4, fixed_abs, tag = 'smem constant byte address 0x4 - core index']
  #allocation1 [shape = 'u32[144,128]{1,0:T(1,128)}', space=vmem, size = 0x12000, scoped, tag = 'internal scratch']
  %s0 = inlined_call_operand.vmem [shape: f32[16,32], index: 0, kind: input, shape index: {}]
  %s1 = inlined_call_operand.vmem [shape: f32[32,128], index: 1, kind: input, shape index: {}]
  %s2 = inlined_call_operand.vmem [shape: f32[1,128], index: 2, kind: input, shape index: {}]
  %s3 = inlined_call_operand.hbm [shape: f32[16,128], index: 3, kind: output, shape index: {}]
  %s4 = sld [smem:[#allocation0]]
  $region45: #{linear_pallas.1} parent=0
    _
  %s6 = ssub.s32 1, %s4
  %s7 = scalar_select 0, %s6, %s4
  $region1: #{linear_pallas.1} parent=0
    #allocation2 [shape = 'u8[8192]{0}', space=vmem, size = 0x2000, scoped, tag = 'output window, operand 0']
    #allocation3 [shape = 's32[2]{0}', space=sflag, size = 0x8, scoped, tag = 'scoped memory for linear_pallas.1']
    %8 = vsyncpa [#allocation3], 0
    %s9 = scalar_lea.sflag [#allocation3], 1
    %10 = vsyncpa %s9, 0
    loop: start=0, step=1, limit=4
    $region2: #{linear_pallas.1} parent=1 // loop_pre_header
      _
    $region3: #{linear_pallas.1} parent=1 // loop_header
      %s12 = sphi 0, %s16
      %p13 = scmp.ge.s32.totalorder %s12, 4
      %s22 = sphi 0, %s24
      %s25 = sphi 0, %s22
      %s26 = sphi 0, %s25
      %s42 = sphi 0, %s26
      %s46 = sphi 0, %s46
      %s48 = sphi 0, %s46
      %s49 = sphi 0, %s48
      %s63 = sphi 0, %s49
      %s67 = sphi 0, %s67
      %s69 = sphi 0, %s67
      %s70 = sphi 0, %s69
      %s84 = sphi 0, %s70
      %s90 = sphi 0, %s92
      %s93 = sphi 0, %s90
      %s94 = sphi 0, %s93
      %s110 = sphi 0, %s94
    $region4: #{linear_pallas.1} parent=1 // loop_header_branch
      %15 = sbr.rel (%p13) target = $region8
    $region5: #{linear_pallas.1} parent=1 // loop_body
      %s17 = ssub.s32 %s12, 1
      %s18 = ssub.s32 %s12, 2
      %s19 = sadd.s32 %s12, 1
      %s20 = ssub.s32 %s12, %s19
      %p21 = scmp.eq.s32.totalorder %s20, 0
      %s23 = sadd.s32 %s22, 1
      %s24 = scalar_select %p21, %s22, %s23
      %p27 = pneg %p21
      %p28 = scmp.eq.s32.totalorder %s12, 1
      %p29 = por %p27, %p28
      %p30 = scmp.ne.s32.totalorder %s22, %s25
      %p31 = scmp.eq.s32.totalorder %s12, 0
      %p32 = por %p30, %p31
      %p33 = scmp.ne.s32.totalorder %s22, %s25
      %p34 = scmp.eq.s32.totalorder %s17, 1
      %p35 = por %p33, %p34
      %p36 = scmp.ne.s32.totalorder %s25, %s26
      %p37 = scmp.eq.s32.totalorder %s17, 0
      %p38 = por %p36, %p37
      %p39 = scmp.ne.s32.totalorder %s25, %s26
      %p40 = scmp.eq.s32.totalorder %s18, 1
      %p41 = por %p39, %p40
      %p43 = scmp.ne.s32.totalorder %s26, %s42
      %p44 = scmp.eq.s32.totalorder %s18, 0
      %p45 = por %p43, %p44
      %s47 = sadd.s32 %s46, 1
      %p50 = scmp.eq.s32.totalorder %s12, 1
      %p51 = scmp.ne.s32.totalorder %s46, %s48
      %p52 = scmp.eq.s32.totalorder %s12, 0
      %p53 = por %p51, %p52
      %p54 = scmp.ne.s32.totalorder %s46, %s48
      %p55 = scmp.eq.s32.totalorder %s17, 1
      %p56 = por %p54, %p55
      %p57 = scmp.ne.s32.totalorder %s48, %s49
      %p58 = scmp.eq.s32.totalorder %s17, 0
      %p59 = por %p57, %p58
      %p60 = scmp.ne.s32.totalorder %s48, %s49
      %p61 = scmp.eq.s32.totalorder %s18, 1
      %p62 = por %p60, %p61
      %p64 = scmp.ne.s32.totalorder %s49, %s63
      %p65 = scmp.eq.s32.totalorder %s18, 0
      %p66 = por %p64, %p65
      %s68 = sadd.s32 %s67, 1
      %p71 = scmp.eq.s32.totalorder %s12, 1
      %p72 = scmp.ne.s32.totalorder %s67, %s69
      %p73 = scmp.eq.s32.totalorder %s12, 0
      %p74 = por %p72, %p73
      %p75 = scmp.ne.s32.totalorder %s67, %s69
      %p76 = scmp.eq.s32.totalorder %s17, 1
      %p77 = por %p75, %p76
      %p78 = scmp.ne.s32.totalorder %s69, %s70
      %p79 = scmp.eq.s32.totalorder %s17, 0
      %p80 = por %p78, %p79
      %p81 = scmp.ne.s32.totalorder %s69, %s70
      %p82 = scmp.eq.s32.totalorder %s18, 1
      %p83 = por %p81, %p82
      %p85 = scmp.ne.s32.totalorder %s70, %s84
      %p86 = scmp.eq.s32.totalorder %s18, 0
      %p87 = por %p85, %p86
      %s88 = ssub.s32 %s12, %s19
      %p89 = scmp.eq.s32.totalorder %s88, 0
      %s91 = sadd.s32 %s90, 1
      %s92 = scalar_select %p89, %s90, %s91
      %p95 = pneg %p89
      %p96 = scmp.eq.s32.totalorder %s12, 1
      %p97 = por %p95, %p96
      %p98 = scmp.ne.s32.totalorder %s90, %s93
      %p99 = scmp.eq.s32.totalorder %s12, 0
      %p100 = por %p98, %p99
      %p101 = scmp.ne.s32.totalorder %s90, %s93
      %p102 = scmp.eq.s32.totalorder %s17, 1
      %p103 = por %p101, %p102
      %p104 = scmp.ne.s32.totalorder %s93, %s94
      %p105 = scmp.eq.s32.totalorder %s17, 0
      %p106 = por %p104, %p105
      %p107 = scmp.ne.s32.totalorder %s93, %s94
      %p108 = scmp.eq.s32.totalorder %s18, 1
      %p109 = por %p107, %p108
      %p111 = scmp.ne.s32.totalorder %s94, %s110
      %p112 = scmp.eq.s32.totalorder %s18, 0
      %p113 = por %p111, %p112
      %p114 = scmp.le.s32.totalorder 1, %s12
      %p115 = scmp.lt.s32.totalorder %s12, 3
      %p116 = pnand %p114, %p115
      %p117 = pneg %p116
      // Predicated region
      $region9: #{linear_pallas.1} parent=5 // pred_check
        _
      $region10: #{linear_pallas.1} parent=5 // pred_check_branch
        %119 = sbr.rel (%p116) target = $region12
      $region11: #{linear_pallas.1} parent=5 // pred_region
        %s120 = ssub.s32 %s12, 1
        // Predicated region
        $region13: #{linear_pallas.1} parent=11 // pred_check
          %p121 = pneg %p59
        $region14: #{linear_pallas.1} parent=11 // pred_check_branch
          %123 = sbr.rel (%p121) target = $region16
        $region15: #{linear_pallas.1} parent=11 // pred_region
          _
        $region16: #{linear_pallas.1} parent=11 // pred_fallthru
          _
        // Predicated region
        $region17: #{linear_pallas.1} parent=11 // pred_check
          %p124 = pneg %p80
        $region18: #{linear_pallas.1} parent=11 // pred_check_branch
          %126 = sbr.rel (%p124) target = $region20
        $region19: #{linear_pallas.1} parent=11 // pred_region
          _
        $region20: #{linear_pallas.1} parent=11 // pred_fallthru
          _
      $region12: #{linear_pallas.1} parent=5 // pred_fallthru
        _
      %p127 = scmp.lt.s32.totalorder %s12, 2
      // Predicated region
      $region21: #{linear_pallas.1} parent=5 // pred_check
        %p128 = pneg %p127
      $region22: #{linear_pallas.1} parent=5 // pred_check_branch
        %130 = sbr.rel (%p128) target = $region24
      $region23: #{linear_pallas.1} parent=5 // pred_region
        // Predicated region
        $region25: #{linear_pallas.1} parent=23 // pred_check
          %p131 = pneg %p32
        $region26: #{linear_pallas.1} parent=23 // pred_check_branch
          %133 = sbr.rel (%p131) target = $region28
        $region27: #{linear_pallas.1} parent=23 // pred_region
          %p134 = scmp.lt.s32.totalorder %s12, 1
          %s135 = scalar_select %p134, %s12, 1
          %s136 = smul.addr %s135, 8
          %s137 = scalar_lea.vmem %s0, %s136
        $region28: #{linear_pallas.1} parent=23 // pred_fallthru
          _
      $region24: #{linear_pallas.1} parent=5 // pred_fallthru
        _
      %p138 = scmp.le.s32.totalorder 1, %s12
      %p139 = scmp.lt.s32.totalorder %s12, 3
      %p140 = pnand %p138, %p139
      %p141 = pneg %p140
      // Predicated region
      $region29: #{linear_pallas.1} parent=5 // pred_check
        _
      $region30: #{linear_pallas.1} parent=5 // pred_check_branch
        %143 = sbr.rel (%p140) target = $region32
      $region31: #{linear_pallas.1} parent=5 // pred_region
        %s144 = ssub.s32 %s12, 1
        %p145 = scmp.lt.s32.totalorder %s17, 1
        %s146 = scalar_select %p145, %s17, 1
        %s147 = smul.addr %s146, 8
        %s148 = scalar_lea.vmem %s0, %s147
        %p149 = pneg %p38
        %p150 = pneg %p35
        %p151 = pneg %p59
        %p152 = pneg %p56
        %p153 = pneg %p80
        %p154 = pneg %p77
        %p155 = pneg %p106
        %p156 = pneg %p103
        %s157 = sand.u32 %s93, 1
        %s158 = scalar_lea.sflag [#allocation3], %s157
        %s159 = sand.u32 %s93, 1
        %s160 = smul.addr %s159, 8
        %s161 = scalar_lea.vmem [#allocation2], %s160
        %p162 = scmp.lt.s32.totalorder %s17, 1
        %s163 = scalar_select %p162, %s17, 1
        %s164 = smul.addr %s163, 8
        %s165 = scalar_lea.vmem %s0, %s164
        %v166 = vld [vmem:[%s165] sm:$0xff]
        %v167 = vld [vmem:[%s1] sm:$0xff]
        %v168 = vld [vmem:[%s1 + $0x8] sm:$0xff]
        %v169 = vld [vmem:[%s1 + $0x10] sm:$0xff]
        %v170 = vld [vmem:[%s1 + $0x18] sm:$0xff]
        %v171 = vld [vmem:[%s2] sm:$0x1]
        %v173 = vlaneseq
        %v174 = vshrl.u32 %v173, 7
        %v175 = vsub.s32 0, %v174
        %v176 = vrot.slane %v171, %v175
        %vm178 = vcmask 261120
        %v180 = vsel %vm178, %v166, 0
        %182 = vmatprep.subr.mxu0 0.0
        %183 = vmatpush1.msra.mxu0 0.0
        %184 = vmatprep.subr.mxu0 0.0
        %185 = vmatpush1.msra.mxu0 0.0
        %186 = vmatprep.subr.mxu0 0.0
        %187 = vmatpush1.msra.mxu0 0.0
        %188 = vmatprep.subr.mxu0 0.0
        %189 = vmatpush1.msra.mxu0 0.0
        %190 = vmatprep.subr.mxu0 0.0
        %191 = vmatpush1.msra.mxu0 0.0
        %192 = vmatprep.subr.mxu0 0.0
        %193 = vmatpush1.msra.mxu0 0.0
        %194 = vmatprep.subr.mxu0 0.0
        %195 = vmatpush1.msra.mxu0 0.0
        %196 = vmatprep.subr.mxu0 0.0
        %197 = vmatpush1.msra.mxu0 0.0
        %198 = vmatprep.subr.mxu0 0.0
        %199 = vmatpush1.msra.mxu0 0.0
        %200 = vmatprep.subr.mxu0 0.0
        %201 = vmatpush1.msra.mxu0 0.0
        %202 = vmatprep.subr.mxu0 0.0
        %203 = vmatpush1.msra.mxu0 0.0
        %204 = vmatprep.subr.mxu0 0.0
        %205 = vmatpush1.msra.mxu0 0.0
        %206 = vmatprep.subr.mxu0 0.0
        %207 = vmatpush1.msra.mxu0 %v170
        %208 = vmatprep.subr.mxu0 0.0
        %209 = vmatpush1.msra.mxu0 %v169
        %210 = vmatprep.subr.mxu0 0.0
        %211 = vmatpush1.msra.mxu0 %v168
        %212 = vmatprep.subr.mxu0 0.0
        %213 = vmatpush1.msra.mxu0 %v167
        %214 = vmatprep.subr.mxu0 0.0
        %215 = vmatpush2.msra.mxu0 0.0
        %216 = vmatprep.subr.mxu0 0.0
        %217 = vmatpush2.msra.mxu0 0.0
        %218 = vmatprep.subr.mxu0 0.0
        %219 = vmatpush2.msra.mxu0 0.0
        %220 = vmatprep.subr.mxu0 0.0
        %221 = vmatpush2.msra.mxu0 0.0
        %222 = vmatprep.subr.mxu0 0.0
        %223 = vmatpush2.msra.mxu0 0.0
        %224 = vmatprep.subr.mxu0 0.0
        %225 = vmatpush2.msra.mxu0 0.0
        %226 = vmatprep.subr.mxu0 0.0
        %227 = vmatpush2.msra.mxu0 0.0
        %228 = vmatprep.subr.mxu0 0.0
        %229 = vmatpush2.msra.mxu0 0.0
        %230 = vmatprep.subr.mxu0 0.0
        %231 = vmatpush2.msra.mxu0 0.0
        %232 = vmatprep.subr.mxu0 0.0
        %233 = vmatpush2.msra.mxu0 0.0
        %234 = vmatprep.subr.mxu0 0.0
        %235 = vmatpush2.msra.mxu0 0.0
        %236 = vmatprep.subr.mxu0 0.0
        %237 = vmatpush2.msra.mxu0 0.0
        %238 = vmatprep.subr.mxu0 0.0
        %239 = vmatpush2.msra.mxu0 0.0
        %240 = vmatprep.subr.mxu0 0.0
        %241 = vmatpush2.msra.mxu0 0.0
        %242 = vmatprep.subr.mxu0 0.0
        %243 = vmatpush2.msra.mxu0 0.0
        %244 = vmatprep.subr.mxu0 0.0
        %245 = vmatpush2.msra.mxu0 0.0
        %246 = vmatprep.mubr.f32.mxu0 0.0
        %247 = vmatmul.mubr.f32.gmra.mxu0 %v180
        %v248 = vpop.f32.mrf.mxu0
        %v249 = vadd.f32 %v176, %v248
        %v250 = vpop.f32.mrf.mxu0
        %251 = vdwg.mxu0
        %252 = vst [vmem:[%s161] sm:$0xff] %v249
        %s253 = sand.u32 %s93, 1
        %s254 = scalar_lea.sflag [#allocation3], %s253
        %s255 = sand.u32 %s93, 1
        %s256 = smul.addr %s255, 8
        %s257 = scalar_lea.vmem [#allocation2], %s256
        // Predicated region
        $region33: #{linear_pallas.1} parent=31 // pred_check
          %p258 = pneg %p103
        $region34: #{linear_pallas.1} parent=31 // pred_check_branch
          %260 = sbr.rel (%p258) target = $region36
        $region35: #{linear_pallas.1} parent=31 // pred_region
          %s262 = ssub.s32 128, 128
          %263 = vsyncadd %s254, %s262
          %s264 = smul.addr %s17, 128
          %s265 = scalar_lea.hbm %s3, %s264
          %s267 = sshll.u32 %s257, 4
          %s268 = int_to_ptr.vmem [resolvable:$true] %s267
          %270 = dma.vmem_to_hbm [thread:$0]  %s268, 128, %s265, %s254
        $region36: #{linear_pallas.1} parent=31 // pred_fallthru
          _
      $region32: #{linear_pallas.1} parent=5 // pred_fallthru
        _
      %p271 = scmp.le.s32.totalorder 2, %s12
      // Predicated region
      $region37: #{linear_pallas.1} parent=5 // pred_check
        %p272 = pneg %p271
      $region38: #{linear_pallas.1} parent=5 // pred_check_branch
        %274 = sbr.rel (%p272) target = $region40
      $region39: #{linear_pallas.1} parent=5 // pred_region
        %s275 = ssub.s32 %s12, 2
        // Predicated region
        $region41: #{linear_pallas.1} parent=39 // pred_check
          %p276 = pneg %p109
        $region42: #{linear_pallas.1} parent=39 // pred_check_branch
          %278 = sbr.rel (%p276) target = $region44
        $region43: #{linear_pallas.1} parent=39 // pred_region
          %s279 = sand.u32 %s94, 1
          %s280 = scalar_lea.sflag [#allocation3], %s279
          %s281 = sand.u32 %s94, 1
          %s282 = smul.addr %s281, 8
          %s283 = scalar_lea.vmem [#allocation2], %s282
          %284 = dma.done %s280, 128
        $region44: #{linear_pallas.1} parent=39 // pred_fallthru
          _
      $region40: #{linear_pallas.1} parent=5 // pred_fallthru
        _
    $region6: #{linear_pallas.1} parent=1 // loop_footer
      %s16 = sadd.s32 1, %s12
    $region7: #{linear_pallas.1} parent=1 // loop_footer_branch
      %11 = sbr.rel target = $region3
    $region8: #{linear_pallas.1} parent=1 // loop_exit
      _
    %285 = vsyncpa [#allocation3], 1
    %s286 = scalar_lea.sflag [#allocation3], 1
    %287 = vsyncpa %s286, 1

</llo_original>
